<compile_context>
chip_gen: v7x
topology: tpu7x:2x2x1
jax: 0.10.0
libtpu: 0.0.40
codegen_flags: <defaults>
</compile_context>

<pallas_src>
import jax
import jax.numpy as jnp
from jax.experimental import pallas as pl
from jax.experimental.pallas import tpu as pltpu


def _round_up(n, m):
    return ((n + m - 1) // m) * m


def qnet_kernel(xT_ref, w1t_ref, b1_ref, w2t_ref, b2_ref, w3r_ref, b3_ref, o_ref):
    """One batch tile: x^T (S, TB) -> q (1, TB); batch lives on the lane axis."""
    # Layer 1 (MXU): (H, S) @ (S, TB) -> (H, TB), f32 accumulate; bias+ReLU on VPU.
    h1 = jnp.dot(w1t_ref[...], xT_ref[...], preferred_element_type=jnp.float32)
    h1 = jnp.maximum(h1 + b1_ref[...], 0.0)
    # Layer 2 (MXU): (H, H) @ (H, TB) -> (H, TB).
    h2 = jnp.dot(w2t_ref[...], h1.astype(w2t_ref.dtype),
                 preferred_element_type=jnp.float32)
    h2 = jnp.maximum(h2 + b2_ref[...], 0.0)
    # Layer 3 on the MXU as (1, H) @ (H, TB): lane-dense result, and the H-long
    # reduction rides the otherwise-idle matmul slot instead of VPU/XLU.
    q = jnp.dot(w3r_ref[...], h2.astype(w3r_ref.dtype),
                preferred_element_type=jnp.float32)
    o_ref[...] = q + b3_ref[0]


def qnetwork_forward(x, params, *, tile_b=4096, batch_major=True,
                     compute_dtype=jnp.float32):
    """QNetwork forward as a single fused pallas_call.

    x: (B, S) float32 when batch_major=True (matches the PyTorch forward), or an
       already batch-on-lanes (S, B) array when batch_major=False (skips the
       wrapper-side transpose, i.e. one fewer HBM pass over the dominant stream).
    params: w1 (S,H), b1 (1,H), w2 (H,H), b2 (1,H), w3 (H,1), b3 (1,1).
    Returns (B, 1) float32.
    """
    if batch_major:
        B, S = x.shape
    else:
        S, B = x.shape
    H = params["w1"].shape[1]

    # Lane-dense batch tiling: tile_b is a multiple of 128; large default to
    # amortize per-step overhead, capped so B >= 256 always yields >= 2 grid
    # steps (both TensorCores busy on v7x; extra steps are ~free on v5e/v6e).
    tile_b = _round_up(max(tile_b, 128), 128)
    if B >= 256:
        tile_b = min(tile_b, _round_up(-(-B // 2), 128))
    else:
        tile_b = min(tile_b, _round_up(B, 128))
    B_pad = _round_up(B, tile_b)
    grid = (B_pad // tile_b,)

    # Layout plumbing. Weights are tiny; x is only rewritten if it needs a
    # transpose (batch_major path) and/or pad.
    xT = x.T if batch_major else x                      # (S, B), batch on lanes
    if B_pad != B:
        xT = jnp.pad(xT, ((0, 0), (0, B_pad - B)))
    xT = xT.astype(compute_dtype)                       # (S, B_pad)

    w1t = params["w1"].T.astype(compute_dtype)          # (H, S)
    w2t = params["w2"].T.astype(compute_dtype)          # (H, H)
    w3r = params["w3"].T.astype(compute_dtype)          # (1, H) row -> MXU layer 3
    b1c = params["b1"].reshape(H, 1).astype(jnp.float32)
    b2c = params["b2"].reshape(H, 1).astype(jnp.float32)
    b3s = params["b3"].reshape(1).astype(jnp.float32)   # scalar -> SMEM

    itm = jnp.dtype(compute_dtype).itemsize
    flops = 2 * B_pad * (S * H + H * H + H)
    bytes_accessed = (itm * B_pad * S + 4 * B_pad
                      + itm * (S * H + H * H + H) + 4 * (2 * H + 1))

    in_specs = [
        # x^T tile; batch on lanes. TODO(synk): add pipeline_mode=pl.Buffered(3)
        # here if profiling at small tile_b shows the x DMA exposed.
        pl.BlockSpec((S, tile_b), lambda i: (0, i)),
        pl.BlockSpec((H, S), lambda i: (0, 0)),                # w1^T (grid-invariant)
        pl.BlockSpec((H, 1), lambda i: (0, 0)),                # b1 column
        pl.BlockSpec((H, H), lambda i: (0, 0)),                # w2^T
        pl.BlockSpec((H, 1), lambda i: (0, 0)),                # b2 column
        pl.BlockSpec((1, H), lambda i: (0, 0)),                # w3 row
        pl.BlockSpec(memory_space=pltpu.MemorySpace.SMEM),     # b3 scalar in SMEM
    ]
    out_specs = pl.BlockSpec((1, tile_b), lambda i: (0, i))    # lane-dense output

    out = pl.pallas_call(
        qnet_kernel,
        out_shape=jax.ShapeDtypeStruct((1, B_pad), jnp.float32),
        grid_spec=pltpu.PrefetchScalarGridSpec(
            num_scalar_prefetch=0,
            grid=grid,
            in_specs=in_specs,
            out_specs=out_specs,
        ),
        compiler_params=pltpu.CompilerParams(
            dimension_semantics=("parallel",),
        ),
        cost_estimate=pl.CostEstimate(
            flops=flops, transcendentals=0, bytes_accessed=bytes_accessed,
        ),
    )(xT, w1t, b1c, w2t, b2c, w3r, b3s)

    return out[0, :B].reshape(B, 1)


def init_params(key, state_size, hidden_size):
    """PyTorch nn.Linear default init: U(-1/sqrt(fan_in), 1/sqrt(fan_in))."""
    ks = jax.random.split(key, 6)

    def lin(kw, kb, fan_in, fan_out):
        bound = 1.0 / jnp.sqrt(jnp.float32(fan_in))
        w = jax.random.uniform(kw, (fan_in, fan_out), jnp.float32, -bound, bound)
        b = jax.random.uniform(kb, (1, fan_out), jnp.float32, -bound, bound)
        return w, b

    w1, b1 = lin(ks[0], ks[1], state_size, hidden_size)
    w2, b2 = lin(ks[2], ks[3], hidden_size, hidden_size)
    w3, b3 = lin(ks[4], ks[5], hidden_size, 1)
    return {"w1": w1, "b1": b1, "w2": w2, "b2": b2, "w3": w3, "b3": b3}


def reference_forward(x, p):
    h1 = jnp.maximum(x @ p["w1"] + p["b1"], 0.0)
    h2 = jnp.maximum(h1 @ p["w2"] + p["b2"], 0.0)
    return h2 @ p["w3"] + p["b3"]


if __name__ == "__main__":
    key = jax.random.PRNGKey(0)
    kx, kx2, kp = jax.random.split(key, 3)

    state_size, hidden_size = 4, 32
    params = init_params(kp, state_size, hidden_size)

    # Small demo batch (single 128-wide tile after padding).
    x_small = jax.random.normal(kx, (8, state_size), jnp.float32)
    out_small = jax.block_until_ready(qnetwork_forward(x_small, params))
    ref_small = reference_forward(x_small, params)
    assert out_small.shape == (8, 1)
    assert jnp.allclose(out_small, ref_small, atol=1e-5, rtol=1e-5), "small mismatch"

    # Larger, non-divisible batch: padding + a >=2-step parallel grid
    # (tile_b capped to 256 here so both TensorCores get a tile on v7x).
    x_big = jax.random.normal(kx2, (300, state_size), jnp.float32)
    out_big = jax.block_until_ready(qnetwork_forward(x_big, params))
    ref_big = reference_forward(x_big, params)
    assert out_big.shape == (300, 1)
    assert jnp.allclose(out_big, ref_big, atol=1e-5, rtol=1e-5), "big mismatch"

    # Pre-transposed (batch-on-lanes) input path: skips the wrapper transpose.
    out_t = jax.block_until_ready(
        qnetwork_forward(x_big.T, params, batch_major=False))
    assert out_t.shape == (300, 1)
    assert jnp.allclose(out_t, ref_big, atol=1e-5, rtol=1e-5), "transposed mismatch"

    # Optional bf16 streams (halves x/weight HBM traffic; mainly a v5e win).
    # Accumulation stays f32, so only a loose tolerance vs the f32 reference.
    out_bf16 = jax.block_until_ready(
        qnetwork_forward(x_big, params, compute_dtype=jnp.bfloat16))
    assert jnp.allclose(out_bf16, ref_big, atol=1e-1, rtol=1e-1), "bf16 mismatch"

    print("KERNEL_OK")
</pallas_src>

<mosaic_0001>
module attributes {stable_mosaic.version = 11 : i64} {
  func.func @qnet_kernel(%arg0: i32, %arg1: memref<4x128xf32, #tpu.memory_space<vmem>>, %arg2: memref<32x4xf32, #tpu.memory_space<vmem>>, %arg3: memref<32x1xf32, #tpu.memory_space<vmem>>, %arg4: memref<32x32xf32, #tpu.memory_space<vmem>>, %arg5: memref<32x1xf32, #tpu.memory_space<vmem>>, %arg6: memref<1x32xf32, #tpu.memory_space<vmem>>, %arg7: memref<1xf32, #tpu.memory_space<smem>>, %arg8: memref<1x128xf32, #tpu.memory_space<vmem>>) attributes {dimension_semantics = [#tpu.dimension_semantics<parallel>], iteration_bounds = array<i64: 1>, scalar_prefetch = 0 : i64, scratch_operands = 0 : i64, tpu.core_type = #tpu.core_type<tc>, window_params = [{transform_indices = @transform_0, window_bounds = array<i64: 4, 128>}, {pipeline_mode = #tpu.pipeline_mode<synchronous>, transform_indices = @transform_1, window_bounds = array<i64: 32, 4>}, {pipeline_mode = #tpu.pipeline_mode<synchronous>, transform_indices = @transform_2, window_bounds = array<i64: 32, 1>}, {pipeline_mode = #tpu.pipeline_mode<synchronous>, transform_indices = @transform_3, window_bounds = array<i64: 32, 32>}, {pipeline_mode = #tpu.pipeline_mode<synchronous>, transform_indices = @transform_4, window_bounds = array<i64: 32, 1>}, {pipeline_mode = #tpu.pipeline_mode<synchronous>, transform_indices = @transform_5, window_bounds = array<i64: 1, 32>}, {transform_indices = @transform_6, window_bounds = array<i64: 1>}, {transform_indices = @transform_7, window_bounds = array<i64: 1, 128>}]} {
    %c0 = arith.constant 0 : index
    %c0_0 = arith.constant 0 : index
    %0 = vector.load %arg2[%c0, %c0_0] : memref<32x4xf32, #tpu.memory_space<vmem>>, vector<32x4xf32>
    %c0_1 = arith.constant 0 : index
    %c0_2 = arith.constant 0 : index
    %1 = vector.load %arg1[%c0_1, %c0_2] : memref<4x128xf32, #tpu.memory_space<vmem>>, vector<4x128xf32>
    %cst = arith.constant dense<0.000000e+00> : vector<32x128xf32>
    %2 = tpu.matmul %0, %1, %cst {dimension_numbers = #tpu.dot_dimension_numbers<[1], [0], [0], [1], [0, 0, 1, 1], [], []>} : vector<32x4xf32>, vector<4x128xf32>, vector<32x128xf32> -> vector<32x128xf32>
    %c0_3 = arith.constant 0 : index
    %c0_4 = arith.constant 0 : index
    %3 = vector.load %arg3[%c0_3, %c0_4] : memref<32x1xf32, #tpu.memory_space<vmem>>, vector<32x1xf32>
    %4 = vector.broadcast %3 : vector<32x1xf32> to vector<32x128xf32>
    %5 = arith.addf %2, %4 : vector<32x128xf32>
    %cst_5 = arith.constant 0.000000e+00 : f32
    %6 = vector.broadcast %cst_5 : f32 to vector<32x128xf32>
    %7 = arith.maximumf %5, %6 : vector<32x128xf32>
    %c0_6 = arith.constant 0 : index
    %c0_7 = arith.constant 0 : index
    %8 = vector.load %arg4[%c0_6, %c0_7] : memref<32x32xf32, #tpu.memory_space<vmem>>, vector<32x32xf32>
    %cst_8 = arith.constant dense<0.000000e+00> : vector<32x128xf32>
    %9 = tpu.matmul %8, %7, %cst_8 {dimension_numbers = #tpu.dot_dimension_numbers<[1], [0], [0], [1], [0, 0, 1, 1], [], []>} : vector<32x32xf32>, vector<32x128xf32>, vector<32x128xf32> -> vector<32x128xf32>
    %c0_9 = arith.constant 0 : index
    %c0_10 = arith.constant 0 : index
    %10 = vector.load %arg5[%c0_9, %c0_10] : memref<32x1xf32, #tpu.memory_space<vmem>>, vector<32x1xf32>
    %11 = vector.broadcast %10 : vector<32x1xf32> to vector<32x128xf32>
    %12 = arith.addf %9, %11 : vector<32x128xf32>
    %cst_11 = arith.constant 0.000000e+00 : f32
    %13 = vector.broadcast %cst_11 : f32 to vector<32x128xf32>
    %14 = arith.maximumf %12, %13 : vector<32x128xf32>
    %c0_12 = arith.constant 0 : index
    %c0_13 = arith.constant 0 : index
    %15 = vector.load %arg6[%c0_12, %c0_13] : memref<1x32xf32, #tpu.memory_space<vmem>>, vector<1x32xf32>
    %cst_14 = arith.constant dense<0.000000e+00> : vector<1x128xf32>
    %16 = tpu.matmul %15, %14, %cst_14 {dimension_numbers = #tpu.dot_dimension_numbers<[1], [0], [0], [1], [0, 0, 1, 1], [], []>} : vector<1x32xf32>, vector<32x128xf32>, vector<1x128xf32> -> vector<1x128xf32>
    %c0_15 = arith.constant 0 : index
    %17 = memref.load %arg7[%c0_15] : memref<1xf32, #tpu.memory_space<smem>>
    %18 = vector.broadcast %17 : f32 to vector<1x128xf32>
    %19 = arith.addf %16, %18 : vector<1x128xf32>
    %c0_16 = arith.constant 0 : index
    %c0_17 = arith.constant 0 : index
    %20 = vector.load %arg8[%c0_16, %c0_17] : memref<1x128xf32, #tpu.memory_space<vmem>>, vector<1x128xf32>
    tpu.vector_store %arg8[%c0_16, %c0_17], %19 {strides = array<i32>} : memref<1x128xf32, #tpu.memory_space<vmem>>, vector<1x128xf32>,
    return
  }
  func.func @transform_0(%arg0: i32) -> (i32, i32) {
    %c0_i32 = arith.constant 0 : i32
    %c0_i32_0 = arith.constant 0 : i32
    return %c0_i32, %arg0 : i32, i32
  }
  func.func @transform_1(%arg0: i32) -> (i32, i32) {
    %c0_i32 = arith.constant 0 : i32
    %c0_i32_0 = arith.constant 0 : i32
    %c0_i32_1 = arith.constant 0 : i32
    return %c0_i32, %c0_i32_0 : i32, i32
  }
  func.func @transform_2(%arg0: i32) -> (i32, i32) {
    %c0_i32 = arith.constant 0 : i32
    %c0_i32_0 = arith.constant 0 : i32
    %c0_i32_1 = arith.constant 0 : i32
    return %c0_i32, %c0_i32_0 : i32, i32
  }
  func.func @transform_3(%arg0: i32) -> (i32, i32) {
    %c0_i32 = arith.constant 0 : i32
    %c0_i32_0 = arith.constant 0 : i32
    %c0_i32_1 = arith.constant 0 : i32
    return %c0_i32, %c0_i32_0 : i32, i32
  }
  func.func @transform_4(%arg0: i32) -> (i32, i32) {
    %c0_i32 = arith.constant 0 : i32
    %c0_i32_0 = arith.constant 0 : i32
    %c0_i32_1 = arith.constant 0 : i32
    return %c0_i32, %c0_i32_0 : i32, i32
  }
  func.func @transform_5(%arg0: i32) -> (i32, i32) {
    %c0_i32 = arith.constant 0 : i32
    %c0_i32_0 = arith.constant 0 : i32
    %c0_i32_1 = arith.constant 0 : i32
    return %c0_i32, %c0_i32_0 : i32, i32
  }
  func.func @transform_6(%arg0: i32) -> i32 {
    %c0_i32 = arith.constant 0 : i32
    %c0_i32_0 = arith.constant 0 : i32
    return %c0_i32 : i32
  }
  func.func @transform_7(%arg0: i32) -> (i32, i32) {
    %c0_i32 = arith.constant 0 : i32
    %c0_i32_0 = arith.constant 0 : i32
    return %c0_i32, %arg0 : i32, i32
  }
}

</mosaic_0001>

<llo_original>
// kernel: tpu_custom_call.1
$region0: #{tpu_custom_call.1}
  #allocation0 [shape = 'u32[]', space=smem, size = 0x4, offset = 0x4, fixed_abs, tag = 'smem constant byte address 0x4 - core index']
  #allocation1 [shape = 'u32[144,128]{1,0:T(1,128)}', space=vmem, size = 0x12000, scoped, tag = 'internal scratch']
  #allocation2 [shape = 'f32[1]{0:T(128)S(6)}', space=smem, size = 0x200, scoped, tag = 'scoped memory for tpu_custom_call.1']
  %s0 = inlined_call_operand.vmem [shape: f32[4,128], index: 0, kind: input, shape index: {}]
  %s1 = inlined_call_operand.vmem [shape: f32[32,4], index: 1, kind: input, shape index: {}]
  %s2 = inlined_call_operand.vmem [shape: f32[32,1], index: 2, kind: input, shape index: {}]
  %s3 = inlined_call_operand.vmem [shape: f32[32,32], index: 3, kind: input, shape index: {}]
  %s4 = inlined_call_operand.vmem [shape: f32[32,1], index: 4, kind: input, shape index: {}]
  %s5 = inlined_call_operand.vmem [shape: f32[1,32], index: 5, kind: input, shape index: {}]
  %s6 = inlined_call_operand.<no memory space> [shape: f32[1], index: 6, kind: input, shape index: {}]
  %s7 = inlined_call_operand.hbm [shape: f32[1,128], index: 7, kind: output, shape index: {}]
  %s8 = sld [smem:[#allocation0]]
  $region38: #{tpu_custom_call.1} parent=0
    _
  %s10 = ssub.s32 1, %s8
  %s11 = scalar_select 0, %s10, %s8
  %12 = sst [smem:[#allocation2]] %s6
  $region1: #{tpu_custom_call.1} parent=0
    #allocation3 [shape = 'u8[512]{0}', space=vmem, size = 0x400, scoped, tag = 'output window, operand 0, single buffered']
    #allocation4 [shape = 's32[1]{0}', space=sflag, size = 0x4, scoped, tag = 'scoped memory for tpu_custom_call.1']
    %13 = vsyncpa [#allocation4], 0
    // Predicated region
    $region2: #{tpu_custom_call.1} parent=1 // pred_check
      _
    $region3: #{tpu_custom_call.1} parent=1 // pred_check_branch
      %15 = sbr.rel (0) target = $region5
    $region4: #{tpu_custom_call.1} parent=1 // pred_region
      _
    $region5: #{tpu_custom_call.1} parent=1 // pred_fallthru
      _
    // Predicated region
    $region6: #{tpu_custom_call.1} parent=1 // pred_check
      _
    $region7: #{tpu_custom_call.1} parent=1 // pred_check_branch
      %17 = sbr.rel (0) target = $region9
    $region8: #{tpu_custom_call.1} parent=1 // pred_region
      _
    $region9: #{tpu_custom_call.1} parent=1 // pred_fallthru
      _
    // Predicated region
    $region10: #{tpu_custom_call.1} parent=1 // pred_check
      _
    $region11: #{tpu_custom_call.1} parent=1 // pred_check_branch
      %19 = sbr.rel (0) target = $region13
    $region12: #{tpu_custom_call.1} parent=1 // pred_region
      _
    $region13: #{tpu_custom_call.1} parent=1 // pred_fallthru
      _
    // Predicated region
    $region14: #{tpu_custom_call.1} parent=1 // pred_check
      _
    $region15: #{tpu_custom_call.1} parent=1 // pred_check_branch
      %21 = sbr.rel (0) target = $region17
    $region16: #{tpu_custom_call.1} parent=1 // pred_region
      _
    $region17: #{tpu_custom_call.1} parent=1 // pred_fallthru
      _
    // Predicated region
    $region18: #{tpu_custom_call.1} parent=1 // pred_check
      _
    $region19: #{tpu_custom_call.1} parent=1 // pred_check_branch
      %23 = sbr.rel (0) target = $region21
    $region20: #{tpu_custom_call.1} parent=1 // pred_region
      _
    $region21: #{tpu_custom_call.1} parent=1 // pred_fallthru
      _
    // Predicated region
    $region22: #{tpu_custom_call.1} parent=1 // pred_check
      _
    $region23: #{tpu_custom_call.1} parent=1 // pred_check_branch
      %25 = sbr.rel (0) target = $region25
    $region24: #{tpu_custom_call.1} parent=1 // pred_region
      _
    $region25: #{tpu_custom_call.1} parent=1 // pred_fallthru
      _
    // Predicated region
    $region26: #{tpu_custom_call.1} parent=1 // pred_check
      _
    $region27: #{tpu_custom_call.1} parent=1 // pred_check_branch
      %27 = sbr.rel (0) target = $region29
    $region28: #{tpu_custom_call.1} parent=1 // pred_region
      _
    $region29: #{tpu_custom_call.1} parent=1 // pred_fallthru
      _
    %v28 = vld [vmem:[%s1] sm:$0xff]
    %v29 = vld [vmem:[%s1 + $0x8] sm:$0xff]
    %v30 = vld [vmem:[%s1 + $0x10] sm:$0xff]
    %v31 = vld [vmem:[%s1 + $0x18] sm:$0xff]
    %v32 = vld [vmem:[%s0] sm:$0xf]
    %v33 = vld [vmem:[%s2] sm:$0xff]
    %v34 = vld [vmem:[%s2 + $0x8] sm:$0xff]
    %v35 = vld [vmem:[%s2 + $0x10] sm:$0xff]
    %v36 = vld [vmem:[%s2 + $0x18] sm:$0xff]
    %38 = vset.pattern.permute.xlu0 0
    %39 = vperm.xlu0 %38, %v33
    %v40 = vpop.permute.xlu0 %39
    %43 = vset.pattern.permute.xlu0 0
    %44 = vperm.xlu0 %43, %v34
    %v45 = vpop.permute.xlu0 %44
    %48 = vset.pattern.permute.xlu0 0
    %49 = vperm.xlu0 %48, %v35
    %v50 = vpop.permute.xlu0 %49
    %53 = vset.pattern.permute.xlu0 0
    %54 = vperm.xlu0 %53, %v36
    %v55 = vpop.permute.xlu0 %54
    %vm57 = vcmask 31744
    %v59 = vsel %vm57, %v28, 0
    %v62 = vsel %vm57, %v29, 0
    %v65 = vsel %vm57, %v30, 0
    %v68 = vsel %vm57, %v31, 0
    %vm70 = vcmask 1043456
    %v72 = vsel %vm70, %v32, 0
    %74 = vmatprep.subr.mxu0 0.0
    %75 = vmatpush1.msra.mxu0 %v72
    %76 = vmatprep.subr.mxu0 0.0
    %77 = vmatpush1.msra.mxu0 0.0
    %78 = vmatprep.subr.mxu0 0.0
    %79 = vmatpush1.msra.mxu0 0.0
    %80 = vmatprep.subr.mxu0 0.0
    %81 = vmatpush1.msra.mxu0 0.0
    %82 = vmatprep.subr.mxu0 0.0
    %83 = vmatpush1.msra.mxu0 0.0
    %84 = vmatprep.subr.mxu0 0.0
    %85 = vmatpush1.msra.mxu0 0.0
    %86 = vmatprep.subr.mxu0 0.0
    %87 = vmatpush1.msra.mxu0 0.0
    %88 = vmatprep.subr.mxu0 0.0
    %89 = vmatpush1.msra.mxu0 0.0
    %90 = vmatprep.subr.mxu0 0.0
    %91 = vmatpush1.msra.mxu0 0.0
    %92 = vmatprep.subr.mxu0 0.0
    %93 = vmatpush1.msra.mxu0 0.0
    %94 = vmatprep.subr.mxu0 0.0
    %95 = vmatpush1.msra.mxu0 0.0
    %96 = vmatprep.subr.mxu0 0.0
    %97 = vmatpush1.msra.mxu0 0.0
    %98 = vmatprep.subr.mxu0 0.0
    %99 = vmatpush1.msra.mxu0 0.0
    %100 = vmatprep.subr.mxu0 0.0
    %101 = vmatpush1.msra.mxu0 0.0
    %102 = vmatprep.subr.mxu0 0.0
    %103 = vmatpush1.msra.mxu0 0.0
    %104 = vmatprep.subr.mxu0 0.0
    %105 = vmatpush1.msra.mxu0 0.0
    %106 = vmatprep.subr.mxu0 0.0
    %107 = vmatpush1.msra.mxu0 0.0
    %108 = vmatprep.subr.mxu0 0.0
    %109 = vmatpush1.msra.mxu0 0.0
    %110 = vmatprep.subr.mxu0 0.0
    %111 = vmatpush1.msra.mxu0 0.0
    %112 = vmatprep.subr.mxu0 0.0
    %113 = vmatpush1.msra.mxu0 0.0
    %114 = vmatprep.subr.mxu0 0.0
    %115 = vmatpush1.msra.mxu0 0.0
    %116 = vmatprep.subr.mxu0 0.0
    %117 = vmatpush1.msra.mxu0 0.0
    %118 = vmatprep.subr.mxu0 0.0
    %119 = vmatpush1.msra.mxu0 0.0
    %120 = vmatprep.subr.mxu0 0.0
    %121 = vmatpush1.msra.mxu0 0.0
    %122 = vmatprep.subr.mxu0 0.0
    %123 = vmatpush1.msra.mxu0 0.0
    %124 = vmatprep.subr.mxu0 0.0
    %125 = vmatpush1.msra.mxu0 0.0
    %126 = vmatprep.subr.mxu0 0.0
    %127 = vmatpush1.msra.mxu0 0.0
    %128 = vmatprep.subr.mxu0 0.0
    %129 = vmatpush1.msra.mxu0 0.0
    %130 = vmatprep.subr.mxu0 0.0
    %131 = vmatpush1.msra.mxu0 0.0
    %132 = vmatprep.subr.mxu0 0.0
    %133 = vmatpush1.msra.mxu0 0.0
    %134 = vmatprep.subr.mxu0 0.0
    %135 = vmatpush1.msra.mxu0 0.0
    %136 = vmatprep.subr.mxu0 0.0
    %137 = vmatpush1.msra.mxu0 0.0
    %138 = vmatprep.mubr.f32.mxu0 0.0
    %139 = vmatmul.mubr.f32.gmra.mrb[0].mxu0 %v59
    %v140 = vpop.f32.mrb[0].mxu0
    %v141 = vadd.f32 %v40, %v140
    %v142 = vpop.f32.mrb[0].mxu0
    %143 = vmatprep.mubr.f32.mxu0 0.0
    %144 = vmatmul.mubr.f32.gmra.mrb[0].mxu0 %v62
    %v145 = vpop.f32.mrb[0].mxu0
    %v146 = vadd.f32 %v45, %v145
    %v147 = vpop.f32.mrb[0].mxu0
    %148 = vmatprep.mubr.f32.mxu0 0.0
    %149 = vmatmul.mubr.f32.gmra.mrb[0].mxu0 %v65
    %v150 = vpop.f32.mrb[0].mxu0
    %v151 = vadd.f32 %v50, %v150
    %v152 = vpop.f32.mrb[0].mxu0
    %153 = vmatprep.mubr.f32.mxu0 0.0
    %154 = vmatmul.mubr.f32.gmra.mrb[0].mxu0 %v68
    %v155 = vpop.f32.mrb[0].mxu0
    %v156 = vadd.f32 %v55, %v155
    %v157 = vpop.f32.mrb[0].mxu0
    %158 = vdwg.mxu0
    %v159 = vmax.f32 %v141, 0.0
    %v160 = vmax.f32 %v146, 0.0
    %v161 = vmax.f32 %v151, 0.0
    %v162 = vmax.f32 %v156, 0.0
    %v163 = vld [vmem:[%s3] sm:$0xff]
    %v164 = vld [vmem:[%s3 + $0x8] sm:$0xff]
    %v165 = vld [vmem:[%s3 + $0x10] sm:$0xff]
    %v166 = vld [vmem:[%s3 + $0x18] sm:$0xff]
    %v167 = vld [vmem:[%s4] sm:$0xff]
    %v168 = vld [vmem:[%s4 + $0x8] sm:$0xff]
    %v169 = vld [vmem:[%s4 + $0x10] sm:$0xff]
    %v170 = vld [vmem:[%s4 + $0x18] sm:$0xff]
    %172 = vset.pattern.permute.xlu0 0
    %173 = vperm.xlu0 %172, %v167
    %v174 = vpop.permute.xlu0 %173
    %177 = vset.pattern.permute.xlu0 0
    %178 = vperm.xlu0 %177, %v168
    %v179 = vpop.permute.xlu0 %178
    %182 = vset.pattern.permute.xlu0 0
    %183 = vperm.xlu0 %182, %v169
    %v184 = vpop.permute.xlu0 %183
    %187 = vset.pattern.permute.xlu0 0
    %188 = vperm.xlu0 %187, %v170
    %v189 = vpop.permute.xlu0 %188
    %vm191 = vcmask 261120
    %v193 = vsel %vm191, %v163, 0
    %v196 = vsel %vm191, %v164, 0
    %v199 = vsel %vm191, %v165, 0
    %v202 = vsel %vm191, %v166, 0
    %204 = vmatprep.subr.mxu0 0.0
    %205 = vmatpush1.msra.mxu0 %v159
    %206 = vmatprep.subr.mxu0 0.0
    %207 = vmatpush1.msra.mxu0 %v160
    %208 = vmatprep.subr.mxu0 0.0
    %209 = vmatpush1.msra.mxu0 %v161
    %210 = vmatprep.subr.mxu0 0.0
    %211 = vmatpush1.msra.mxu0 %v162
    %212 = vmatprep.subr.mxu0 0.0
    %213 = vmatpush1.msra.mxu0 0.0
    %214 = vmatprep.subr.mxu0 0.0
    %215 = vmatpush1.msra.mxu0 0.0
    %216 = vmatprep.subr.mxu0 0.0
    %217 = vmatpush1.msra.mxu0 0.0
    %218 = vmatprep.subr.mxu0 0.0
    %219 = vmatpush1.msra.mxu0 0.0
    %220 = vmatprep.subr.mxu0 0.0
    %221 = vmatpush1.msra.mxu0 0.0
    %222 = vmatprep.subr.mxu0 0.0
    %223 = vmatpush1.msra.mxu0 0.0
    %224 = vmatprep.subr.mxu0 0.0
    %225 = vmatpush1.msra.mxu0 0.0
    %226 = vmatprep.subr.mxu0 0.0
    %227 = vmatpush1.msra.mxu0 0.0
    %228 = vmatprep.subr.mxu0 0.0
    %229 = vmatpush1.msra.mxu0 0.0
    %230 = vmatprep.subr.mxu0 0.0
    %231 = vmatpush1.msra.mxu0 0.0
    %232 = vmatprep.subr.mxu0 0.0
    %233 = vmatpush1.msra.mxu0 0.0
    %234 = vmatprep.subr.mxu0 0.0
    %235 = vmatpush1.msra.mxu0 0.0
    %236 = vmatprep.subr.mxu0 0.0
    %237 = vmatpush1.msra.mxu0 0.0
    %238 = vmatprep.subr.mxu0 0.0
    %239 = vmatpush1.msra.mxu0 0.0
    %240 = vmatprep.subr.mxu0 0.0
    %241 = vmatpush1.msra.mxu0 0.0
    %242 = vmatprep.subr.mxu0 0.0
    %243 = vmatpush1.msra.mxu0 0.0
    %244 = vmatprep.subr.mxu0 0.0
    %245 = vmatpush1.msra.mxu0 0.0
    %246 = vmatprep.subr.mxu0 0.0
    %247 = vmatpush1.msra.mxu0 0.0
    %248 = vmatprep.subr.mxu0 0.0
    %249 = vmatpush1.msra.mxu0 0.0
    %250 = vmatprep.subr.mxu0 0.0
    %251 = vmatpush1.msra.mxu0 0.0
    %252 = vmatprep.subr.mxu0 0.0
    %253 = vmatpush1.msra.mxu0 0.0
    %254 = vmatprep.subr.mxu0 0.0
    %255 = vmatpush1.msra.mxu0 0.0
    %256 = vmatprep.subr.mxu0 0.0
    %257 = vmatpush1.msra.mxu0 0.0
    %258 = vmatprep.subr.mxu0 0.0
    %259 = vmatpush1.msra.mxu0 0.0
    %260 = vmatprep.subr.mxu0 0.0
    %261 = vmatpush1.msra.mxu0 0.0
    %262 = vmatprep.subr.mxu0 0.0
    %263 = vmatpush1.msra.mxu0 0.0
    %264 = vmatprep.subr.mxu0 0.0
    %265 = vmatpush1.msra.mxu0 0.0
    %266 = vmatprep.subr.mxu0 0.0
    %267 = vmatpush1.msra.mxu0 0.0
    %268 = vmatprep.mubr.f32.mxu0 0.0
    %269 = vmatmul.mubr.f32.gmra.mrb[0].mxu0 %v193
    %v270 = vpop.f32.mrb[0].mxu0
    %v271 = vadd.f32 %v174, %v270
    %v272 = vpop.f32.mrb[0].mxu0
    %273 = vmatprep.mubr.f32.mxu0 0.0
    %274 = vmatmul.mubr.f32.gmra.mrb[0].mxu0 %v196
    %v275 = vpop.f32.mrb[0].mxu0
    %v276 = vadd.f32 %v179, %v275
    %v277 = vpop.f32.mrb[0].mxu0
    %278 = vmatprep.mubr.f32.mxu0 0.0
    %279 = vmatmul.mubr.f32.gmra.mrb[0].mxu0 %v199
    %v280 = vpop.f32.mrb[0].mxu0
    %v281 = vadd.f32 %v184, %v280
    %v282 = vpop.f32.mrb[0].mxu0
    %283 = vmatprep.mubr.f32.mxu0 0.0
    %284 = vmatmul.mubr.f32.gmra.mrb[0].mxu0 %v202
    %v285 = vpop.f32.mrb[0].mxu0
    %v286 = vadd.f32 %v189, %v285
    %v287 = vpop.f32.mrb[0].mxu0
    %288 = vdwg.mxu0
    %v289 = vmax.f32 %v271, 0.0
    %v290 = vmax.f32 %v276, 0.0
    %v291 = vmax.f32 %v281, 0.0
    %v292 = vmax.f32 %v286, 0.0
    %v293 = vld [vmem:[%s5] sm:$0x1]
    %s294 = sld [smem:[#allocation2]]
    %v295 = vstv %s294
    %v297 = vsel %vm191, %v293, 0
    %299 = vmatprep.subr.mxu0 0.0
    %300 = vmatpush1.msra.mxu0 %v289
    %301 = vmatprep.subr.mxu0 0.0
    %302 = vmatpush1.msra.mxu0 %v290
    %303 = vmatprep.subr.mxu0 0.0
    %304 = vmatpush1.msra.mxu0 %v291
    %305 = vmatprep.subr.mxu0 0.0
    %306 = vmatpush1.msra.mxu0 %v292
    %307 = vmatprep.subr.mxu0 0.0
    %308 = vmatpush1.msra.mxu0 0.0
    %309 = vmatprep.subr.mxu0 0.0
    %310 = vmatpush1.msra.mxu0 0.0
    %311 = vmatprep.subr.mxu0 0.0
    %312 = vmatpush1.msra.mxu0 0.0
    %313 = vmatprep.subr.mxu0 0.0
    %314 = vmatpush1.msra.mxu0 0.0
    %315 = vmatprep.subr.mxu0 0.0
    %316 = vmatpush1.msra.mxu0 0.0
    %317 = vmatprep.subr.mxu0 0.0
    %318 = vmatpush1.msra.mxu0 0.0
    %319 = vmatprep.subr.mxu0 0.0
    %320 = vmatpush1.msra.mxu0 0.0
    %321 = vmatprep.subr.mxu0 0.0
    %322 = vmatpush1.msra.mxu0 0.0
    %323 = vmatprep.subr.mxu0 0.0
    %324 = vmatpush1.msra.mxu0 0.0
    %325 = vmatprep.subr.mxu0 0.0
    %326 = vmatpush1.msra.mxu0 0.0
    %327 = vmatprep.subr.mxu0 0.0
    %328 = vmatpush1.msra.mxu0 0.0
    %329 = vmatprep.subr.mxu0 0.0
    %330 = vmatpush1.msra.mxu0 0.0
    %331 = vmatprep.subr.mxu0 0.0
    %332 = vmatpush1.msra.mxu0 0.0
    %333 = vmatprep.subr.mxu0 0.0
    %334 = vmatpush1.msra.mxu0 0.0
    %335 = vmatprep.subr.mxu0 0.0
    %336 = vmatpush1.msra.mxu0 0.0
    %337 = vmatprep.subr.mxu0 0.0
    %338 = vmatpush1.msra.mxu0 0.0
    %339 = vmatprep.subr.mxu0 0.0
    %340 = vmatpush1.msra.mxu0 0.0
    %341 = vmatprep.subr.mxu0 0.0
    %342 = vmatpush1.msra.mxu0 0.0
    %343 = vmatprep.subr.mxu0 0.0
    %344 = vmatpush1.msra.mxu0 0.0
    %345 = vmatprep.subr.mxu0 0.0
    %346 = vmatpush1.msra.mxu0 0.0
    %347 = vmatprep.subr.mxu0 0.0
    %348 = vmatpush1.msra.mxu0 0.0
    %349 = vmatprep.subr.mxu0 0.0
    %350 = vmatpush1.msra.mxu0 0.0
    %351 = vmatprep.subr.mxu0 0.0
    %352 = vmatpush1.msra.mxu0 0.0
    %353 = vmatprep.subr.mxu0 0.0
    %354 = vmatpush1.msra.mxu0 0.0
    %355 = vmatprep.subr.mxu0 0.0
    %356 = vmatpush1.msra.mxu0 0.0
    %357 = vmatprep.subr.mxu0 0.0
    %358 = vmatpush1.msra.mxu0 0.0
    %359 = vmatprep.subr.mxu0 0.0
    %360 = vmatpush1.msra.mxu0 0.0
    %361 = vmatprep.subr.mxu0 0.0
    %362 = vmatpush1.msra.mxu0 0.0
    %363 = vmatprep.mubr.f32.mxu0 0.0
    %364 = vmatmul.mubr.f32.gmra.mrb[0].mxu0 %v297
    %v365 = vpop.f32.mrb[0].mxu0
    %v366 = vadd.f32 %v295, %v365
    %v367 = vpop.f32.mrb[0].mxu0
    %368 = vdwg.mxu0
    %369 = vst [vmem:[#allocation3] sm:$0x1] %v366
    // Predicated region
    $region30: #{tpu_custom_call.1} parent=1 // pred_check
      _
    $region31: #{tpu_custom_call.1} parent=1 // pred_check_branch
      %371 = sbr.rel (0) target = $region33
    $region32: #{tpu_custom_call.1} parent=1 // pred_region
      %s373 = ssub.s32 16, 16
      %374 = vsyncadd [#allocation4], %s373
      %s376 = sshll.u32 [#allocation3], 4
      %s377 = int_to_ptr.vmem [resolvable:$true] %s376
      %379 = dma.vmem_to_hbm [thread:$0]  %s377, 16, %s7, [#allocation4]
    $region33: #{tpu_custom_call.1} parent=1 // pred_fallthru
      _
    // Predicated region
    $region34: #{tpu_custom_call.1} parent=1 // pred_check
      _
    $region35: #{tpu_custom_call.1} parent=1 // pred_check_branch
      %381 = sbr.rel (0) target = $region37
    $region36: #{tpu_custom_call.1} parent=1 // pred_region
      %382 = dma.done [#allocation4], 16
    $region37: #{tpu_custom_call.1} parent=1 // pred_fallthru
      _
    %383 = vsyncpa [#allocation4], 1

</llo_original>
